<compile_context>
chip_gen: v6e
topology: v6e:2x2x1
jax: 0.10.0
libtpu: 0.0.40
codegen_flags: <defaults>
</compile_context>

<pallas_src>
import functools

import jax
import jax.numpy as jnp
from jax.experimental import pallas as pl
from jax.experimental.pallas import tpu as pltpu

F32 = jnp.float32


# ----------------------------------------------------------------------------
# Fused EFF kernel: one group of Bblk batch elements per grid step.
# ----------------------------------------------------------------------------
def _eff_kernel(x_ref, masks_ref, w_in_ref, w_out_ref, o_ref, *, H, W, inv_hw):
    """x_ref    : [Bblk*Cin, H*W]          row = b_local*Cin + c
       masks_ref: [9, H*W]                 edge-validity (1/0) per 3x3 tap
       w_in_ref : [Bblk*Cin, Bblk*Cin]     kron(I_Bblk, conv_in 1x1 weight)
       w_out_ref: [Bblk*Cout, 9*Bblk*Cin]  col = k*Bblk*Cin + b_local*Cin + c
       o_ref    : [Bblk*Cout, H*W]         row = b_local*Cout + o
    """
    HW = H * W
    x = x_ref[...]
    masks = masks_ref[...]

    # conv_in: 1x1, no bias -- one MXU matmul for the whole batch group.
    y = jnp.dot(w_in_ref[...], x, preferred_element_type=jnp.float32)

    # DSC subspace attention: the attention map is provably the constant
    # 1/(H*W) (see module-level derivation), so modulate + residual is one
    # fused multiply-add, identical arithmetic to `p * xs + xs`.
    cat = y * inv_hw + y

    # conv_out: 3x3, pad 1, no bias.  Nine taps via XLU lane rotations +
    # precomputed edge masks (zero fill), stacked on the sublane axis and
    # consumed by ONE MXU matmul with K = 9*Bblk*Cin.
    taps = []
    for oi in (-1, 0, 1):
        for oj in (-1, 0, 1):
            if oi == 0 and oj == 0:
                taps.append(cat)
            else:
                k = (oi + 1) * 3 + (oj + 1)
                shift = (-(oi * W + oj)) % HW          # static
                rolled = pltpu.roll(cat, shift=shift, axis=1)
                taps.append(rolled * masks[k:k + 1, :])
    taps = jnp.concatenate(taps, axis=0)               # [9*Bblk*Cin, HW]
    # TODO(synk): cast taps / w_out_ref to bf16 on v6e/v7x for large channels.
    out = jnp.dot(w_out_ref[...], taps, preferred_element_type=jnp.float32)
    o_ref[...] = out.astype(o_ref.dtype)


# ----------------------------------------------------------------------------
# Wrapper
# ----------------------------------------------------------------------------
def _choose_blocking(B, Cin, Cout):
    # Two fat grid steps: amortizes per-step overhead on single-TC v5e/v6e and
    # keeps both v7x TensorCores busy (the batch axis is marked "parallel").
    n_steps = 2 if B > 1 else 1
    b_blk = -(-B // n_steps)
    if n_steps > 1:
        # keep the sublane dims of the x / out blocks 8-aligned (f32 tiling)
        while (b_blk * Cin) % 8 or (b_blk * Cout) % 8:
            b_blk += 1
    return n_steps, b_blk


def _eff_forward(x_nchw, params, num_splits):
    B, Cin, H, W = x_nchw.shape
    Cout = params['w_out'].shape[0]
    HW = H * W
    # num_splits only parameterizes the (provably dead) DSC chain.
    assert Cin % num_splits == 0

    n_steps, b_blk = _choose_blocking(B, Cin, Cout)
    B_pad = n_steps * b_blk
    R = b_blk * Cin

    # ---- host-side weight packing (batch-block-diagonal, sublane-packed) ---
    eye_b = jnp.eye(b_blk, dtype=F32)
    w_in_bd = jnp.kron(eye_b, params['w_in'].astype(F32))            # [R, R]
    w_taps = jnp.transpose(params['w_out'].astype(F32),
                           (2, 3, 0, 1)).reshape(9, Cout, Cin)       # [9,Co,Ci]
    w_out_big = jnp.einsum('bd,koc->bokdc', eye_b, w_taps)
    w_out_big = w_out_big.reshape(b_blk * Cout, 9 * R)

    # ---- 3x3 edge-validity masks, one per tap, precomputed once ------------
    rows = jnp.arange(H, dtype=jnp.int32).reshape(H, 1)
    cols = jnp.arange(W, dtype=jnp.int32).reshape(1, W)
    mask_list = []
    for oi in (-1, 0, 1):
        for oj in (-1, 0, 1):
            ok = ((rows + oi >= 0) & (rows + oi < H) &
                  (cols + oj >= 0) & (cols + oj < W))
            mask_list.append(ok.astype(F32).reshape(HW))
    masks = jnp.stack(mask_list, axis=0)                              # [9, HW]

    # ---- input packing: batch folded onto the sublane axis -----------------
    xf = x_nchw.astype(F32)
    if B_pad != B:
        xf = jnp.concatenate(
            [xf, jnp.zeros((B_pad - B, Cin, H, W), F32)], axis=0)
    xf = xf.reshape(B_pad * Cin, HW)

    inv_hw = 1.0 / float(HW)          # the constant DSC attention weight

    blk_bytes = (4 * HW * (14 * R + 9 + 2 * b_blk * Cout)
                 + 4 * (R * R + b_blk * Cout * 9 * R))
    vmem_limit = int(min(max(4 * blk_bytes, 16 * 2 ** 20), 64 * 2 ** 20))

    kernel = functools.partial(_eff_kernel, H=H, W=W, inv_hw=inv_hw)
    out = pl.pallas_call(
        kernel,
        out_shape=jax.ShapeDtypeStruct((B_pad * Cout, HW), F32),
        grid=(n_steps,),
        in_specs=[
            pl.BlockSpec((R, HW), lambda g: (g, 0)),
            pl.BlockSpec((9, HW), lambda g: (0, 0)),
            pl.BlockSpec((R, R), lambda g: (0, 0)),
            pl.BlockSpec((b_blk * Cout, 9 * R), lambda g: (0, 0)),
        ],
        out_specs=pl.BlockSpec((b_blk * Cout, HW), lambda g: (g, 0)),
        compiler_params=pltpu.CompilerParams(
            dimension_semantics=("parallel",),
            vmem_limit_bytes=vmem_limit),
    )(xf, masks, w_in_bd, w_out_big)
    return out.reshape(B_pad, Cout, H, W)[:B]


eff_forward = jax.jit(_eff_forward, static_argnums=(2,))


# ----------------------------------------------------------------------------
# Pure-JAX (XLA) reference: full op-for-op EFF.forward, for validation only.
# ----------------------------------------------------------------------------
def eff_reference(x, params, num_splits):
    hp = jax.lax.Precision.HIGHEST
    B, C, H, W = x.shape
    csub = C // num_splits
    y = jnp.einsum('oc,bchw->bohw', params['w_in'], x, precision=hp)
    outs = []
    for s in range(num_splits):
        sl = slice(s * csub, (s + 1) * csub)
        xs = y[:, sl]
        rsh = lambda v: v.reshape(1, csub, 1, 1)
        d = xs * rsh(params['dws_w'][sl]) + rsh(params['dws_b'][sl])
        mu = jnp.mean(d, axis=1, keepdims=True)
        var = jnp.mean((d - mu) ** 2, axis=1, keepdims=True)
        d = (d - mu) / jnp.sqrt(var + 1e-5)
        d = d * rsh(params['ln1_g'][sl]) + rsh(params['ln1_b'][sl])
        d = jnp.maximum(d, 0.0)
        d = jax.lax.reduce_window(d, -jnp.inf, jax.lax.max,
                                  (1, 1, 3, 3), (1, 1, 1, 1),
                                  ((0, 0), (0, 0), (1, 1), (1, 1)))
        p = jnp.einsum('c,bchw->bhw', params['pw_w'][sl], d,
                       precision=hp)[:, None] + params['pw_b'][s]
        p = (p - p) / jnp.sqrt(1e-5)                 # LayerNorm over 1 channel
        p = p * params['ln2_g'][s] + params['ln2_b'][s]
        p = jnp.maximum(p, 0.0)
        p = jax.nn.softmax(p.reshape(B, 1, H * W), axis=2).reshape(B, 1, H, W)
        outs.append(p * xs + xs)
    cat = jnp.concatenate(outs, axis=1)
    return jax.lax.conv_general_dilated(
        cat, params['w_out'], (1, 1), ((1, 1), (1, 1)),
        dimension_numbers=('NCHW', 'OIHW', 'NCHW'), precision=hp)


# ----------------------------------------------------------------------------
if __name__ == "__main__":
    def make_params(key, Cin, Cout, num_splits):
        ks = jax.random.split(key, 11)
        p = dict(
            w_in=0.30 * jax.random.normal(ks[0], (Cin, Cin), F32),
            dws_w=1.0 + 0.10 * jax.random.normal(ks[1], (Cin,), F32),
            dws_b=0.10 * jax.random.normal(ks[2], (Cin,), F32),
            ln1_g=1.0 + 0.10 * jax.random.normal(ks[3], (Cin,), F32),
            ln1_b=0.10 * jax.random.normal(ks[4], (Cin,), F32),
            pw_w=0.50 * jax.random.normal(ks[5], (Cin,), F32),
            pw_b=0.10 * jax.random.normal(ks[6], (num_splits,), F32),
            ln2_g=1.0 + 0.10 * jax.random.normal(ks[7], (num_splits,), F32),
            ln2_b=0.10 * jax.random.normal(ks[8], (num_splits,), F32),
            w_out=0.20 * jax.random.normal(ks[9], (Cout, Cin, 3, 3), F32),
        )
        return p, ks[10]

    # Case 1: typical tiny configuration (even batch -> 2 parallel grid steps).
    B, Cin, H, W, Cout, S = 4, 4, 16, 16, 4, 2
    params, kx = make_params(jax.random.PRNGKey(0), Cin, Cout, S)
    x = jax.random.normal(kx, (B, Cin, H, W), F32)
    out = jax.block_until_ready(eff_forward(x, params, S))
    assert out.shape == (B, Cout, H, W), out.shape
    assert bool(jnp.all(jnp.isfinite(out)))
    ref = eff_reference(x, params, S)
    err1 = float(jnp.max(jnp.abs(out - ref)))
    assert err1 < 3e-2, f"case1 max abs err vs reference: {err1}"

    # Case 2: odd batch (exercises block padding) and Cout != Cin.
    B2, Cin2, H2, W2, Cout2, S2 = 3, 4, 16, 16, 8, 2
    params2, kx2 = make_params(jax.random.PRNGKey(1), Cin2, Cout2, S2)
    x2 = jax.random.normal(kx2, (B2, Cin2, H2, W2), F32)
    out2 = jax.block_until_ready(eff_forward(x2, params2, S2))
    assert out2.shape == (B2, Cout2, H2, W2), out2.shape
    ref2 = eff_reference(x2, params2, S2)
    err2 = float(jnp.max(jnp.abs(out2 - ref2)))
    assert err2 < 3e-2, f"case2 max abs err vs reference: {err2}"

    print("KERNEL_OK")
</pallas_src>

<mosaic_0001>
module attributes {stable_mosaic.version = 11 : i64} {
  func.func @_eff_kernel(%arg0: i32, %arg1: memref<8x256xf32, #tpu.memory_space<vmem>>, %arg2: memref<9x256xf32, #tpu.memory_space<vmem>>, %arg3: memref<8x8xf32, #tpu.memory_space<vmem>>, %arg4: memref<8x72xf32, #tpu.memory_space<vmem>>, %arg5: memref<8x256xf32, #tpu.memory_space<vmem>>) attributes {dimension_semantics = [#tpu.dimension_semantics<parallel>], iteration_bounds = array<i64: 2>, scalar_prefetch = 0 : i64, scratch_operands = 0 : i64, tpu.core_type = #tpu.core_type<tc>, window_params = [{transform_indices = @transform_0, window_bounds = array<i64: 8, 256>}, {pipeline_mode = #tpu.pipeline_mode<synchronous>, transform_indices = @transform_1, window_bounds = array<i64: 9, 256>}, {pipeline_mode = #tpu.pipeline_mode<synchronous>, transform_indices = @transform_2, window_bounds = array<i64: 8, 8>}, {pipeline_mode = #tpu.pipeline_mode<synchronous>, transform_indices = @transform_3, window_bounds = array<i64: 8, 72>}, {transform_indices = @transform_4, window_bounds = array<i64: 8, 256>}]} {
    %c0 = arith.constant 0 : index
    %c0_0 = arith.constant 0 : index
    %0 = vector.load %arg1[%c0, %c0_0] : memref<8x256xf32, #tpu.memory_space<vmem>>, vector<8x256xf32>
    %c0_1 = arith.constant 0 : index
    %c0_2 = arith.constant 0 : index
    %1 = vector.load %arg2[%c0_1, %c0_2] : memref<9x256xf32, #tpu.memory_space<vmem>>, vector<9x256xf32>
    %c0_3 = arith.constant 0 : index
    %c0_4 = arith.constant 0 : index
    %2 = vector.load %arg3[%c0_3, %c0_4] : memref<8x8xf32, #tpu.memory_space<vmem>>, vector<8x8xf32>
    %cst = arith.constant dense<0.000000e+00> : vector<8x256xf32>
    %3 = tpu.matmul %2, %0, %cst {dimension_numbers = #tpu.dot_dimension_numbers<[1], [0], [0], [1], [0, 0, 1, 1], [], []>} : vector<8x8xf32>, vector<8x256xf32>, vector<8x256xf32> -> vector<8x256xf32>
    %cst_5 = arith.constant 3.906250e-03 : f32
    %4 = vector.broadcast %cst_5 : f32 to vector<8x256xf32>
    %5 = arith.mulf %3, %4 : vector<8x256xf32>
    %6 = arith.addf %5, %3 : vector<8x256xf32>
    %c17_i32 = arith.constant 17 : i32
    %7 = tpu.dynamic_rotate %6 by %c17_i32 dim 1 : vector<8x256xf32>, i32 -> vector<8x256xf32>
    %8 = vector.extract_strided_slice %1 {offsets = [0, 0], sizes = [1, 256], strides = [1, 1]} : vector<9x256xf32> to vector<1x256xf32>
    %9 = vector.broadcast %8 : vector<1x256xf32> to vector<8x256xf32>
    %10 = arith.mulf %7, %9 : vector<8x256xf32>
    %c16_i32 = arith.constant 16 : i32
    %11 = tpu.dynamic_rotate %6 by %c16_i32 dim 1 : vector<8x256xf32>, i32 -> vector<8x256xf32>
    %12 = vector.extract_strided_slice %1 {offsets = [1, 0], sizes = [1, 256], strides = [1, 1]} : vector<9x256xf32> to vector<1x256xf32>
    %13 = vector.broadcast %12 : vector<1x256xf32> to vector<8x256xf32>
    %14 = arith.mulf %11, %13 : vector<8x256xf32>
    %c15_i32 = arith.constant 15 : i32
    %15 = tpu.dynamic_rotate %6 by %c15_i32 dim 1 : vector<8x256xf32>, i32 -> vector<8x256xf32>
    %16 = vector.extract_strided_slice %1 {offsets = [2, 0], sizes = [1, 256], strides = [1, 1]} : vector<9x256xf32> to vector<1x256xf32>
    %17 = vector.broadcast %16 : vector<1x256xf32> to vector<8x256xf32>
    %18 = arith.mulf %15, %17 : vector<8x256xf32>
    %c1_i32 = arith.constant 1 : i32
    %19 = tpu.dynamic_rotate %6 by %c1_i32 dim 1 : vector<8x256xf32>, i32 -> vector<8x256xf32>
    %20 = vector.extract_strided_slice %1 {offsets = [3, 0], sizes = [1, 256], strides = [1, 1]} : vector<9x256xf32> to vector<1x256xf32>
    %21 = vector.broadcast %20 : vector<1x256xf32> to vector<8x256xf32>
    %22 = arith.mulf %19, %21 : vector<8x256xf32>
    %c255_i32 = arith.constant 255 : i32
    %23 = tpu.dynamic_rotate %6 by %c255_i32 dim 1 : vector<8x256xf32>, i32 -> vector<8x256xf32>
    %24 = vector.extract_strided_slice %1 {offsets = [5, 0], sizes = [1, 256], strides = [1, 1]} : vector<9x256xf32> to vector<1x256xf32>
    %25 = vector.broadcast %24 : vector<1x256xf32> to vector<8x256xf32>
    %26 = arith.mulf %23, %25 : vector<8x256xf32>
    %c241_i32 = arith.constant 241 : i32
    %27 = tpu.dynamic_rotate %6 by %c241_i32 dim 1 : vector<8x256xf32>, i32 -> vector<8x256xf32>
    %28 = vector.extract_strided_slice %1 {offsets = [6, 0], sizes = [1, 256], strides = [1, 1]} : vector<9x256xf32> to vector<1x256xf32>
    %29 = vector.broadcast %28 : vector<1x256xf32> to vector<8x256xf32>
    %30 = arith.mulf %27, %29 : vector<8x256xf32>
    %c240_i32 = arith.constant 240 : i32
    %31 = tpu.dynamic_rotate %6 by %c240_i32 dim 1 : vector<8x256xf32>, i32 -> vector<8x256xf32>
    %32 = vector.extract_strided_slice %1 {offsets = [7, 0], sizes = [1, 256], strides = [1, 1]} : vector<9x256xf32> to vector<1x256xf32>
    %33 = vector.broadcast %32 : vector<1x256xf32> to vector<8x256xf32>
    %34 = arith.mulf %31, %33 : vector<8x256xf32>
    %c239_i32 = arith.constant 239 : i32
    %35 = tpu.dynamic_rotate %6 by %c239_i32 dim 1 : vector<8x256xf32>, i32 -> vector<8x256xf32>
    %36 = vector.extract_strided_slice %1 {offsets = [8, 0], sizes = [1, 256], strides = [1, 1]} : vector<9x256xf32> to vector<1x256xf32>
    %37 = vector.broadcast %36 : vector<1x256xf32> to vector<8x256xf32>
    %38 = arith.mulf %35, %37 : vector<8x256xf32>
    %39 = tpu.concatenate %10, %14, %18, %22, %6, %26, %30, %34, %38 in 0 : vector<8x256xf32>, vector<8x256xf32>, vector<8x256xf32>, vector<8x256xf32>, vector<8x256xf32>, vector<8x256xf32>, vector<8x256xf32>, vector<8x256xf32>, vector<8x256xf32> -> vector<72x256xf32>
    %c0_6 = arith.constant 0 : index
    %c0_7 = arith.constant 0 : index
    %40 = vector.load %arg4[%c0_6, %c0_7] : memref<8x72xf32, #tpu.memory_space<vmem>>, vector<8x72xf32>
    %cst_8 = arith.constant dense<0.000000e+00> : vector<8x256xf32>
    %41 = tpu.matmul %40, %39, %cst_8 {dimension_numbers = #tpu.dot_dimension_numbers<[1], [0], [0], [1], [0, 0, 1, 1], [], []>} : vector<8x72xf32>, vector<72x256xf32>, vector<8x256xf32> -> vector<8x256xf32>
    %c0_9 = arith.constant 0 : index
    %c0_10 = arith.constant 0 : index
    %42 = vector.load %arg5[%c0_9, %c0_10] : memref<8x256xf32, #tpu.memory_space<vmem>>, vector<8x256xf32>
    tpu.vector_store %arg5[%c0_9, %c0_10], %41 {strides = array<i32>} : memref<8x256xf32, #tpu.memory_space<vmem>>, vector<8x256xf32>,
    return
  }
  func.func @transform_0(%arg0: i32) -> (i32, i32) {
    %c0_i32 = arith.constant 0 : i32
    %c0_i32_0 = arith.constant 0 : i32
    return %arg0, %c0_i32 : i32, i32
  }
  func.func @transform_1(%arg0: i32) -> (i32, i32) {
    %c0_i32 = arith.constant 0 : i32
    %c0_i32_0 = arith.constant 0 : i32
    %c0_i32_1 = arith.constant 0 : i32
    return %c0_i32, %c0_i32_0 : i32, i32
  }
  func.func @transform_2(%arg0: i32) -> (i32, i32) {
    %c0_i32 = arith.constant 0 : i32
    %c0_i32_0 = arith.constant 0 : i32
    %c0_i32_1 = arith.constant 0 : i32
    return %c0_i32, %c0_i32_0 : i32, i32
  }
  func.func @transform_3(%arg0: i32) -> (i32, i32) {
    %c0_i32 = arith.constant 0 : i32
    %c0_i32_0 = arith.constant 0 : i32
    %c0_i32_1 = arith.constant 0 : i32
    return %c0_i32, %c0_i32_0 : i32, i32
  }
  func.func @transform_4(%arg0: i32) -> (i32, i32) {
    %c0_i32 = arith.constant 0 : i32
    %c0_i32_0 = arith.constant 0 : i32
    return %arg0, %c0_i32 : i32, i32
  }
}

</mosaic_0001>

<llo_original>
// kernel: _eff_forward.1
$region0: #{_eff_forward.1}
  #allocation0 [shape = 'u32[]', space=smem, size = 0x4, offset = 0x4, fixed_abs, tag = 'smem constant byte address 0x4 - core index']
  #allocation1 [shape = 'u32[144,128]{1,0:T(1,128)}', space=vmem, size = 0x12000, scoped, tag = 'internal scratch']
  %s0 = inlined_call_operand.vmem [shape: f32[16,256], index: 0, kind: input, shape index: {}]
  %s1 = inlined_call_operand.vmem [shape: f32[9,256], index: 1, kind: input, shape index: {}]
  %s2 = inlined_call_operand.vmem [shape: f32[8,8], index: 2, kind: input, shape index: {}]
  %s3 = inlined_call_operand.vmem [shape: f32[8,72], index: 3, kind: input, shape index: {}]
  %s4 = inlined_call_operand.vmem [shape: f32[16,256], index: 4, kind: output, shape index: {}]
  %s5 = sld [smem:[#allocation0]]
  $region49: #{_eff_forward.1} parent=0
    _
  %s7 = ssub.s32 1, %s5
  %s8 = scalar_select 0, %s7, %s5
  loop: start=0, step=1, limit=4
  $region2: #{_eff_forward.1} parent=0 // loop_pre_header
    _
  $region3: #{_eff_forward.1} parent=0 // loop_header
    %s10 = sphi 0, %s14
    %p11 = scmp.ge.s32.totalorder %s10, 4
    %s20 = sphi 0, %s22
    %s23 = sphi 0, %s20
    %s24 = sphi 0, %s23
    %s40 = sphi 0, %s24
    %s44 = sphi 0, %s44
    %s46 = sphi 0, %s44
    %s47 = sphi 0, %s46
    %s61 = sphi 0, %s47
    %s65 = sphi 0, %s65
    %s67 = sphi 0, %s65
    %s68 = sphi 0, %s67
    %s82 = sphi 0, %s68
    %s86 = sphi 0, %s86
    %s88 = sphi 0, %s86
    %s89 = sphi 0, %s88
    %s103 = sphi 0, %s89
    %s109 = sphi 0, %s111
    %s112 = sphi 0, %s109
    %s113 = sphi 0, %s112
    %s129 = sphi 0, %s113
  $region4: #{_eff_forward.1} parent=0 // loop_header_branch
    %13 = sbr.rel (%p11) target = $region8
  $region5: #{_eff_forward.1} parent=0 // loop_body
    %s15 = ssub.s32 %s10, 1
    %s16 = ssub.s32 %s10, 2
    %s17 = sadd.s32 %s10, 1
    %s18 = ssub.s32 %s10, %s17
    %p19 = scmp.eq.s32.totalorder %s18, 0
    %s21 = sadd.s32 %s20, 1
    %s22 = scalar_select %p19, %s20, %s21
    %p25 = pneg %p19
    %p26 = scmp.eq.s32.totalorder %s10, 1
    %p27 = por %p25, %p26
    %p28 = scmp.ne.s32.totalorder %s20, %s23
    %p29 = scmp.eq.s32.totalorder %s10, 0
    %p30 = por %p28, %p29
    %p31 = scmp.ne.s32.totalorder %s20, %s23
    %p32 = scmp.eq.s32.totalorder %s15, 1
    %p33 = por %p31, %p32
    %p34 = scmp.ne.s32.totalorder %s23, %s24
    %p35 = scmp.eq.s32.totalorder %s15, 0
    %p36 = por %p34, %p35
    %p37 = scmp.ne.s32.totalorder %s23, %s24
    %p38 = scmp.eq.s32.totalorder %s16, 1
    %p39 = por %p37, %p38
    %p41 = scmp.ne.s32.totalorder %s24, %s40
    %p42 = scmp.eq.s32.totalorder %s16, 0
    %p43 = por %p41, %p42
    %s45 = sadd.s32 %s44, 1
    %p48 = scmp.eq.s32.totalorder %s10, 1
    %p49 = scmp.ne.s32.totalorder %s44, %s46
    %p50 = scmp.eq.s32.totalorder %s10, 0
    %p51 = por %p49, %p50
    %p52 = scmp.ne.s32.totalorder %s44, %s46
    %p53 = scmp.eq.s32.totalorder %s15, 1
    %p54 = por %p52, %p53
    %p55 = scmp.ne.s32.totalorder %s46, %s47
    %p56 = scmp.eq.s32.totalorder %s15, 0
    %p57 = por %p55, %p56
    %p58 = scmp.ne.s32.totalorder %s46, %s47
    %p59 = scmp.eq.s32.totalorder %s16, 1
    %p60 = por %p58, %p59
    %p62 = scmp.ne.s32.totalorder %s47, %s61
    %p63 = scmp.eq.s32.totalorder %s16, 0
    %p64 = por %p62, %p63
    %s66 = sadd.s32 %s65, 1
    %p69 = scmp.eq.s32.totalorder %s10, 1
    %p70 = scmp.ne.s32.totalorder %s65, %s67
    %p71 = scmp.eq.s32.totalorder %s10, 0
    %p72 = por %p70, %p71
    %p73 = scmp.ne.s32.totalorder %s65, %s67
    %p74 = scmp.eq.s32.totalorder %s15, 1
    %p75 = por %p73, %p74
    %p76 = scmp.ne.s32.totalorder %s67, %s68
    %p77 = scmp.eq.s32.totalorder %s15, 0
    %p78 = por %p76, %p77
    %p79 = scmp.ne.s32.totalorder %s67, %s68
    %p80 = scmp.eq.s32.totalorder %s16, 1
    %p81 = por %p79, %p80
    %p83 = scmp.ne.s32.totalorder %s68, %s82
    %p84 = scmp.eq.s32.totalorder %s16, 0
    %p85 = por %p83, %p84
    %s87 = sadd.s32 %s86, 1
    %p90 = scmp.eq.s32.totalorder %s10, 1
    %p91 = scmp.ne.s32.totalorder %s86, %s88
    %p92 = scmp.eq.s32.totalorder %s10, 0
    %p93 = por %p91, %p92
    %p94 = scmp.ne.s32.totalorder %s86, %s88
    %p95 = scmp.eq.s32.totalorder %s15, 1
    %p96 = por %p94, %p95
    %p97 = scmp.ne.s32.totalorder %s88, %s89
    %p98 = scmp.eq.s32.totalorder %s15, 0
    %p99 = por %p97, %p98
    %p100 = scmp.ne.s32.totalorder %s88, %s89
    %p101 = scmp.eq.s32.totalorder %s16, 1
    %p102 = por %p100, %p101
    %p104 = scmp.ne.s32.totalorder %s89, %s103
    %p105 = scmp.eq.s32.totalorder %s16, 0
    %p106 = por %p104, %p105
    %s107 = ssub.s32 %s10, %s17
    %p108 = scmp.eq.s32.totalorder %s107, 0
    %s110 = sadd.s32 %s109, 1
    %s111 = scalar_select %p108, %s109, %s110
    %p114 = pneg %p108
    %p115 = scmp.eq.s32.totalorder %s10, 1
    %p116 = por %p114, %p115
    %p117 = scmp.ne.s32.totalorder %s109, %s112
    %p118 = scmp.eq.s32.totalorder %s10, 0
    %p119 = por %p117, %p118
    %p120 = scmp.ne.s32.totalorder %s109, %s112
    %p121 = scmp.eq.s32.totalorder %s15, 1
    %p122 = por %p120, %p121
    %p123 = scmp.ne.s32.totalorder %s112, %s113
    %p124 = scmp.eq.s32.totalorder %s15, 0
    %p125 = por %p123, %p124
    %p126 = scmp.ne.s32.totalorder %s112, %s113
    %p127 = scmp.eq.s32.totalorder %s16, 1
    %p128 = por %p126, %p127
    %p130 = scmp.ne.s32.totalorder %s113, %s129
    %p131 = scmp.eq.s32.totalorder %s16, 0
    %p132 = por %p130, %p131
    %p133 = scmp.le.s32.totalorder 1, %s10
    %p134 = scmp.lt.s32.totalorder %s10, 3
    %p135 = pnand %p133, %p134
    %p136 = pneg %p135
    // Predicated region
    $region9: #{_eff_forward.1} parent=5 // pred_check
      _
    $region10: #{_eff_forward.1} parent=5 // pred_check_branch
      %138 = sbr.rel (%p135) target = $region12
    $region11: #{_eff_forward.1} parent=5 // pred_region
      %s139 = ssub.s32 %s10, 1
      // Predicated region
      $region13: #{_eff_forward.1} parent=11 // pred_check
        %p140 = pneg %p57
      $region14: #{_eff_forward.1} parent=11 // pred_check_branch
        %142 = sbr.rel (%p140) target = $region16
      $region15: #{_eff_forward.1} parent=11 // pred_region
        _
      $region16: #{_eff_forward.1} parent=11 // pred_fallthru
        _
      // Predicated region
      $region17: #{_eff_forward.1} parent=11 // pred_check
        %p143 = pneg %p78
      $region18: #{_eff_forward.1} parent=11 // pred_check_branch
        %145 = sbr.rel (%p143) target = $region20
      $region19: #{_eff_forward.1} parent=11 // pred_region
        _
      $region20: #{_eff_forward.1} parent=11 // pred_fallthru
        _
      // Predicated region
      $region21: #{_eff_forward.1} parent=11 // pred_check
        %p146 = pneg %p99
      $region22: #{_eff_forward.1} parent=11 // pred_check_branch
        %148 = sbr.rel (%p146) target = $region24
      $region23: #{_eff_forward.1} parent=11 // pred_region
        _
      $region24: #{_eff_forward.1} parent=11 // pred_fallthru
        _
    $region12: #{_eff_forward.1} parent=5 // pred_fallthru
      _
    %p149 = scmp.lt.s32.totalorder %s10, 2
    // Predicated region
    $region25: #{_eff_forward.1} parent=5 // pred_check
      %p150 = pneg %p149
    $region26: #{_eff_forward.1} parent=5 // pred_check_branch
      %152 = sbr.rel (%p150) target = $region28
    $region27: #{_eff_forward.1} parent=5 // pred_region
      // Predicated region
      $region29: #{_eff_forward.1} parent=27 // pred_check
        %p153 = pneg %p30
      $region30: #{_eff_forward.1} parent=27 // pred_check_branch
        %155 = sbr.rel (%p153) target = $region32
      $region31: #{_eff_forward.1} parent=27 // pred_region
        %p156 = scmp.lt.s32.totalorder %s10, 1
        %s157 = scalar_select %p156, %s10, 1
        %s158 = smul.addr %s157, 2
        %s159 = smul.addr %s158, 8
        %s160 = scalar_lea.vmem %s0, %s159
      $region32: #{_eff_forward.1} parent=27 // pred_fallthru
        _
    $region28: #{_eff_forward.1} parent=5 // pred_fallthru
      _
    %p161 = scmp.le.s32.totalorder 1, %s10
    %p162 = scmp.lt.s32.totalorder %s10, 3
    %p163 = pnand %p161, %p162
    %p164 = pneg %p163
    // Predicated region
    $region33: #{_eff_forward.1} parent=5 // pred_check
      _
    $region34: #{_eff_forward.1} parent=5 // pred_check_branch
      %166 = sbr.rel (%p163) target = $region36
    $region35: #{_eff_forward.1} parent=5 // pred_region
      %s167 = ssub.s32 %s10, 1
      %p168 = scmp.lt.s32.totalorder %s15, 1
      %s169 = scalar_select %p168, %s15, 1
      %s170 = smul.addr %s169, 2
      %s171 = smul.addr %s170, 8
      %s172 = scalar_lea.vmem %s0, %s171
      %p173 = pneg %p36
      %p174 = pneg %p33
      %p175 = pneg %p57
      %p176 = pneg %p54
      %p177 = pneg %p78
      %p178 = pneg %p75
      %p179 = pneg %p99
      %p180 = pneg %p96
      %p181 = pneg %p125
      %p182 = pneg %p122
      %p183 = scmp.lt.s32.totalorder %s15, 1
      %s184 = scalar_select %p183, %s15, 1
      %s185 = smul.addr %s184, 2
      %s186 = smul.addr %s185, 8
      %s187 = scalar_lea.vmem %s4, %s186
      %p188 = scmp.lt.s32.totalorder %s15, 1
      %s189 = scalar_select %p188, %s15, 1
      %s190 = smul.addr %s189, 2
      %s191 = smul.addr %s190, 8
      %s192 = scalar_lea.vmem %s0, %s191
      %p193 = scmp.lt.s32.totalorder %s15, 1
      %s194 = scalar_select %p193, %s15, 1
      %s195 = smul.addr %s194, 2
      %s196 = smul.addr %s195, 8
      %s197 = scalar_lea.vmem %s4, %s196
      %v198 = vld [vmem:[%s192] sm:$0xff]
      %v199 = vld [vmem:[%s192 + $0x8] sm:$0xff]
      %v200 = vld [vmem:[%s1] sm:$0xff]
      %v201 = vld [vmem:[%s1 + $0x8] sm:$0xff]
      %v202 = vld [vmem:[%s1 + $0x10] sm:$0x1]
      %v203 = vld [vmem:[%s1 + $0x18] sm:$0x1]
      %v204 = vld [vmem:[%s2] sm:$0xff]
      %vm205 = vcmask 64512
      %v207 = vsel %vm205, %v204, 0
      %209 = vmatprep.subr.mxu0 0.0
      %210 = vmatpush1.msra.mxu0 0.0
      %211 = vmatprep.subr.mxu0 0.0
      %212 = vmatpush1.msra.mxu0 0.0
      %213 = vmatprep.subr.mxu0 0.0
      %214 = vmatpush1.msra.mxu0 0.0
      %215 = vmatprep.subr.mxu0 0.0
      %216 = vmatpush1.msra.mxu0 0.0
      %217 = vmatprep.subr.mxu0 0.0
      %218 = vmatpush1.msra.mxu0 0.0
      %219 = vmatprep.subr.mxu0 0.0
      %220 = vmatpush1.msra.mxu0 0.0
      %221 = vmatprep.subr.mxu0 0.0
      %222 = vmatpush1.msra.mxu0 0.0
      %223 = vmatprep.subr.mxu0 0.0
      %224 = vmatpush1.msra.mxu0 0.0
      %225 = vmatprep.subr.mxu0 0.0
      %226 = vmatpush1.msra.mxu0 0.0
      %227 = vmatprep.subr.mxu0 0.0
      %228 = vmatpush1.msra.mxu0 0.0
      %229 = vmatprep.subr.mxu0 0.0
      %230 = vmatpush1.msra.mxu0 0.0
      %231 = vmatprep.subr.mxu0 0.0
      %232 = vmatpush1.msra.mxu0 0.0
      %233 = vmatprep.subr.mxu0 0.0
      %234 = vmatpush1.msra.mxu0 0.0
      %235 = vmatprep.subr.mxu0 0.0
      %236 = vmatpush1.msra.mxu0 0.0
      %237 = vmatprep.subr.mxu0 0.0
      %238 = vmatpush1.msra.mxu0 0.0
      %239 = vmatprep.subr.mxu0 %v199
      %240 = vmatpush1.msra.mxu0 %v198
      %241 = vmatprep.subr.mxu0 0.0
      %242 = vmatpush2.msra.mxu0 0.0
      %243 = vmatprep.subr.mxu0 0.0
      %244 = vmatpush2.msra.mxu0 0.0
      %245 = vmatprep.subr.mxu0 0.0
      %246 = vmatpush2.msra.mxu0 0.0
      %247 = vmatprep.subr.mxu0 0.0
      %248 = vmatpush2.msra.mxu0 0.0
      %249 = vmatprep.subr.mxu0 0.0
      %250 = vmatpush2.msra.mxu0 0.0
      %251 = vmatprep.subr.mxu0 0.0
      %252 = vmatpush2.msra.mxu0 0.0
      %253 = vmatprep.subr.mxu0 0.0
      %254 = vmatpush2.msra.mxu0 0.0
      %255 = vmatprep.subr.mxu0 0.0
      %256 = vmatpush2.msra.mxu0 0.0
      %257 = vmatprep.subr.mxu0 0.0
      %258 = vmatpush2.msra.mxu0 0.0
      %259 = vmatprep.subr.mxu0 0.0
      %260 = vmatpush2.msra.mxu0 0.0
      %261 = vmatprep.subr.mxu0 0.0
      %262 = vmatpush2.msra.mxu0 0.0
      %263 = vmatprep.subr.mxu0 0.0
      %264 = vmatpush2.msra.mxu0 0.0
      %265 = vmatprep.subr.mxu0 0.0
      %266 = vmatpush2.msra.mxu0 0.0
      %267 = vmatprep.subr.mxu0 0.0
      %268 = vmatpush2.msra.mxu0 0.0
      %269 = vmatprep.subr.mxu0 0.0
      %270 = vmatpush2.msra.mxu0 0.0
      %271 = vmatprep.subr.mxu0 0.0
      %272 = vmatpush2.msra.mxu0 0.0
      %273 = vmatprep.mubr.f32.mxu0 0.0
      %274 = vmatmul.mubr.f32.gmra.mxu0 %v207
      %v275 = vpop.f32.mrf.mxu0
      %v276 = vadd.f32 0.0, %v275
      %v277 = vpop.f32.mrf.mxu0
      %v278 = vadd.f32 0.0, %v277
      %279 = vdwg.mxu0
      %v280 = vmul.f32 %v276, 0.00390625
      %v281 = vmul.f32 %v278, 0.00390625
      %v282 = vadd.f32 %v280, %v276
      %v283 = vadd.f32 %v281, %v278
      %284 = vrot.lane.b32.xlu0 %v282, 17
      %v285 = vpop.permute.xlu0 %284
      %286 = vrot.lane.b32.xlu0 %v283, 17
      %v287 = vpop.permute.xlu0 %286
      %v288 = vlaneseq
      %v289 = vand.u32 %v288, 127
      %vm290 = vcmp.lt.s32.totalorder %v289, 17
      %v291 = vsel %vm290, %v285, %v287
      %v292 = vsel %vm290, %v287, %v285
      %v293 = vlaneseq
      %v294 = vshrl.u32 %v293, 7
      %v295 = vsub.s32 0, %v294
      %v296 = vrot.slane %v200, %v295
      %v297 = vlaneseq
      %v298 = vshrl.u32 %v297, 7
      %v299 = vsub.s32 0, %v298
      %v300 = vrot.slane %v201, %v299
      %v301 = vmul.f32 %v292, %v296
      %v302 = vmul.f32 %v291, %v300
      %303 = vrot.lane.b32.xlu0 %v282, 16
      %v304 = vpop.permute.xlu0 %303
      %305 = vrot.lane.b32.xlu0 %v283, 16
      %v306 = vpop.permute.xlu0 %305
      %vm307 = vcmp.lt.s32.totalorder %v289, 16
      %v308 = vsel %vm307, %v304, %v306
      %v309 = vsel %vm307, %v306, %v304
      %v310 = vlaneseq
      %v311 = vshrl.u32 %v310, 7
      %v312 = vsub.s32 1, %v311
      %v313 = vrot.slane %v200, %v312
      %v314 = vlaneseq
      %v315 = vshrl.u32 %v314, 7
      %v316 = vsub.s32 1, %v315
      %v317 = vrot.slane %v201, %v316
      %v318 = vmul.f32 %v309, %v313
      %v319 = vmul.f32 %v308, %v317
      %320 = vrot.lane.b32.xlu0 %v282, 15
      %v321 = vpop.permute.xlu0 %320
      %322 = vrot.lane.b32.xlu0 %v283, 15
      %v323 = vpop.permute.xlu0 %322
      %vm324 = vcmp.lt.s32.totalorder %v289, 15
      %v325 = vsel %vm324, %v321, %v323
      %v326 = vsel %vm324, %v323, %v321
      %v327 = vlaneseq
      %v328 = vshrl.u32 %v327, 7
      %v329 = vsub.s32 2, %v328
      %v330 = vrot.slane %v200, %v329
      %v331 = vlaneseq
      %v332 = vshrl.u32 %v331, 7
      %v333 = vsub.s32 2, %v332
      %v334 = vrot.slane %v201, %v333
      %v335 = vmul.f32 %v326, %v330
      %v336 = vmul.f32 %v325, %v334
      %337 = vrot.lane.b32.xlu0 %v282, 1
      %v338 = vpop.permute.xlu0 %337
      %339 = vrot.lane.b32.xlu0 %v283, 1
      %v340 = vpop.permute.xlu0 %339
      %vm341 = vcmp.lt.s32.totalorder %v289, 1
      %v342 = vsel %vm341, %v338, %v340
      %v343 = vsel %vm341, %v340, %v338
      %v344 = vlaneseq
      %v345 = vshrl.u32 %v344, 7
      %v346 = vsub.s32 3, %v345
      %v347 = vrot.slane %v200, %v346
      %v348 = vlaneseq
      %v349 = vshrl.u32 %v348, 7
      %v350 = vsub.s32 3, %v349
      %v351 = vrot.slane %v201, %v350
      %v352 = vmul.f32 %v343, %v347
      %v353 = vmul.f32 %v342, %v351
      %354 = vrot.lane.b32.xlu0 %v282, 127
      %v355 = vpop.permute.xlu0 %354
      %356 = vrot.lane.b32.xlu0 %v283, 127
      %v357 = vpop.permute.xlu0 %356
      %vm358 = vcmp.lt.s32.totalorder %v289, 127
      %v359 = vsel %vm358, %v355, %v357
      %v360 = vsel %vm358, %v357, %v355
      %v361 = vlaneseq
      %v362 = vshrl.u32 %v361, 7
      %v363 = vsub.s32 5, %v362
      %v364 = vrot.slane %v200, %v363
      %v365 = vlaneseq
      %v366 = vshrl.u32 %v365, 7
      %v367 = vsub.s32 5, %v366
      %v368 = vrot.slane %v201, %v367
      %v369 = vmul.f32 %v359, %v364
      %v370 = vmul.f32 %v360, %v368
      %371 = vrot.lane.b32.xlu0 %v282, 113
      %v372 = vpop.permute.xlu0 %371
      %373 = vrot.lane.b32.xlu0 %v283, 113
      %v374 = vpop.permute.xlu0 %373
      %vm375 = vcmp.lt.s32.totalorder %v289, 113
      %v376 = vsel %vm375, %v372, %v374
      %v377 = vsel %vm375, %v374, %v372
      %v378 = vlaneseq
      %v379 = vshrl.u32 %v378, 7
      %v380 = vsub.s32 6, %v379
      %v381 = vrot.slane %v200, %v380
      %v382 = vlaneseq
      %v383 = vshrl.u32 %v382, 7
      %v384 = vsub.s32 6, %v383
      %v385 = vrot.slane %v201, %v384
      %v386 = vmul.f32 %v376, %v381
      %v387 = vmul.f32 %v377, %v385
      %388 = vrot.lane.b32.xlu0 %v282, 112
      %v389 = vpop.permute.xlu0 %388
      %390 = vrot.lane.b32.xlu0 %v283, 112
      %v391 = vpop.permute.xlu0 %390
      %vm392 = vcmp.lt.s32.totalorder %v289, 112
      %v393 = vsel %vm392, %v389, %v391
      %v394 = vsel %vm392, %v391, %v389
      %v395 = vlaneseq
      %v396 = vshrl.u32 %v395, 7
      %v397 = vsub.s32 7, %v396
      %v398 = vrot.slane %v200, %v397
      %v399 = vlaneseq
      %v400 = vshrl.u32 %v399, 7
      %v401 = vsub.s32 7, %v400
      %v402 = vrot.slane %v201, %v401
      %v403 = vmul.f32 %v393, %v398
      %v404 = vmul.f32 %v394, %v402
      %405 = vrot.lane.b32.xlu0 %v282, 111
      %v406 = vpop.permute.xlu0 %405
      %407 = vrot.lane.b32.xlu0 %v283, 111
      %v408 = vpop.permute.xlu0 %407
      %vm409 = vcmp.lt.s32.totalorder %v289, 111
      %v410 = vsel %vm409, %v406, %v408
      %v411 = vsel %vm409, %v408, %v406
      %v412 = vlaneseq
      %v413 = vshrl.u32 %v412, 7
      %v414 = vsub.s32 0, %v413
      %v415 = vrot.slane %v202, %v414
      %v416 = vlaneseq
      %v417 = vshrl.u32 %v416, 7
      %v418 = vsub.s32 0, %v417
      %v419 = vrot.slane %v203, %v418
      %v420 = vmul.f32 %v410, %v415
      %v421 = vmul.f32 %v411, %v419
      %v422 = vld [vmem:[%s3] sm:$0xff]
      %vm423 = vcmask 588800
      %v425 = vsel %vm423, %v422, 0
      %427 = vmatprep.subr.mxu0 0.0
      %428 = vmatpush1.msra.mxu0 0.0
      %429 = vmatprep.subr.mxu0 0.0
      %430 = vmatpush1.msra.mxu0 0.0
      %431 = vmatprep.subr.mxu0 0.0
      %432 = vmatpush1.msra.mxu0 0.0
      %433 = vmatprep.subr.mxu0 0.0
      %434 = vmatpush1.msra.mxu0 0.0
      %435 = vmatprep.subr.mxu0 0.0
      %436 = vmatpush1.msra.mxu0 0.0
      %437 = vmatprep.subr.mxu0 0.0
      %438 = vmatpush1.msra.mxu0 0.0
      %439 = vmatprep.subr.mxu0 0.0
      %440 = vmatpush1.msra.mxu0 0.0
      %441 = vmatprep.subr.mxu0 %v421
      %442 = vmatpush1.msra.mxu0 %v420
      %443 = vmatprep.subr.mxu0 %v404
      %444 = vmatpush1.msra.mxu0 %v403
      %445 = vmatprep.subr.mxu0 %v387
      %446 = vmatpush1.msra.mxu0 %v386
      %447 = vmatprep.subr.mxu0 %v370
      %448 = vmatpush1.msra.mxu0 %v369
      %449 = vmatprep.subr.mxu0 %v283
      %450 = vmatpush1.msra.mxu0 %v282
      %451 = vmatprep.subr.mxu0 %v353
      %452 = vmatpush1.msra.mxu0 %v352
      %453 = vmatprep.subr.mxu0 %v336
      %454 = vmatpush1.msra.mxu0 %v335
      %455 = vmatprep.subr.mxu0 %v319
      %456 = vmatpush1.msra.mxu0 %v318
      %457 = vmatprep.subr.mxu0 %v302
      %458 = vmatpush1.msra.mxu0 %v301
      %459 = vmatprep.subr.mxu0 0.0
      %460 = vmatpush2.msra.mxu0 0.0
      %461 = vmatprep.subr.mxu0 0.0
      %462 = vmatpush2.msra.mxu0 0.0
      %463 = vmatprep.subr.mxu0 0.0
      %464 = vmatpush2.msra.mxu0 0.0
      %465 = vmatprep.subr.mxu0 0.0
      %466 = vmatpush2.msra.mxu0 0.0
      %467 = vmatprep.subr.mxu0 0.0
      %468 = vmatpush2.msra.mxu0 0.0
      %469 = vmatprep.subr.mxu0 0.0
      %470 = vmatpush2.msra.mxu0 0.0
      %471 = vmatprep.subr.mxu0 0.0
      %472 = vmatpush2.msra.mxu0 0.0
      %473 = vmatprep.subr.mxu0 0.0
      %474 = vmatpush2.msra.mxu0 0.0
      %475 = vmatprep.subr.mxu0 0.0
      %476 = vmatpush2.msra.mxu0 0.0
      %477 = vmatprep.subr.mxu0 0.0
      %478 = vmatpush2.msra.mxu0 0.0
      %479 = vmatprep.subr.mxu0 0.0
      %480 = vmatpush2.msra.mxu0 0.0
      %481 = vmatprep.subr.mxu0 0.0
      %482 = vmatpush2.msra.mxu0 0.0
      %483 = vmatprep.subr.mxu0 0.0
      %484 = vmatpush2.msra.mxu0 0.0
      %485 = vmatprep.subr.mxu0 0.0
      %486 = vmatpush2.msra.mxu0 0.0
      %487 = vmatprep.subr.mxu0 0.0
      %488 = vmatpush2.msra.mxu0 0.0
      %489 = vmatprep.subr.mxu0 0.0
      %490 = vmatpush2.msra.mxu0 0.0
      %491 = vmatprep.mubr.f32.mxu0 0.0
      %492 = vmatmul.mubr.f32.gmra.mxu0 %v425
      %v493 = vpop.f32.mrf.mxu0
      %v494 = vadd.f32 0.0, %v493
      %v495 = vpop.f32.mrf.mxu0
      %v496 = vadd.f32 0.0, %v495
      %497 = vdwg.mxu0
      %498 = vst [vmem:[%s197] sm:$0xff] %v494
      %499 = vst [vmem:[%s197 + $0x8] sm:$0xff] %v496
      %p500 = scmp.lt.s32.totalorder %s15, 1
      %s501 = scalar_select %p500, %s15, 1
      %s502 = smul.addr %s501, 2
      %s503 = smul.addr %s502, 8
      %s504 = scalar_lea.vmem %s4, %s503
      // Predicated region
      $region37: #{_eff_forward.1} parent=35 // pred_check
        %p505 = pneg %p122
      $region38: #{_eff_forward.1} parent=35 // pred_check_branch
        %507 = sbr.rel (%p505) target = $region40
      $region39: #{_eff_forward.1} parent=35 // pred_region
        _
      $region40: #{_eff_forward.1} parent=35 // pred_fallthru
        _
    $region36: #{_eff_forward.1} parent=5 // pred_fallthru
      _
    %p508 = scmp.le.s32.totalorder 2, %s10
    // Predicated region
    $region41: #{_eff_forward.1} parent=5 // pred_check
      %p509 = pneg %p508
    $region42: #{_eff_forward.1} parent=5 // pred_check_branch
      %511 = sbr.rel (%p509) target = $region44
    $region43: #{_eff_forward.1} parent=5 // pred_region
      %s512 = ssub.s32 %s10, 2
      // Predicated region
      $region45: #{_eff_forward.1} parent=43 // pred_check
        %p513 = pneg %p128
      $region46: #{_eff_forward.1} parent=43 // pred_check_branch
        %515 = sbr.rel (%p513) target = $region48
      $region47: #{_eff_forward.1} parent=43 // pred_region
        %p516 = scmp.lt.s32.totalorder %s16, 1
        %s517 = scalar_select %p516, %s16, 1
        %s518 = smul.addr %s517, 2
        %s519 = smul.addr %s518, 8
        %s520 = scalar_lea.vmem %s4, %s519
      $region48: #{_eff_forward.1} parent=43 // pred_fallthru
        _
    $region44: #{_eff_forward.1} parent=5 // pred_fallthru
      _
  $region6: #{_eff_forward.1} parent=0 // loop_footer
    %s14 = sadd.s32 1, %s10
  $region7: #{_eff_forward.1} parent=0 // loop_footer_branch
    %9 = sbr.rel target = $region3
  $region8: #{_eff_forward.1} parent=0 // loop_exit
    _

</llo_original>
